<compile_context>
chip_gen: v7x
topology: tpu7x:2x2x1
jax: 0.10.0
libtpu: 0.0.40
codegen_flags: <defaults>
</compile_context>

<pallas_src>
import functools

import jax
import jax.numpy as jnp
from jax import lax
from jax.experimental import pallas as pl
from jax.experimental.pallas import tpu as pltpu


def _round_up(x, m):
    return (x + m - 1) // m * m


def _gemm_bias_kernel(cols_ref, w_ref, b_ref, o_ref):
    # cols_ref: (tm, KKCp)    bf16 pooled-im2col rows (2x2 mean pool already folded in)
    # w_ref   : (KKCp, Coutp) bf16 flattened conv weight, N zero-padded to 128-multiple
    # b_ref   : (1, Coutp)    f32 bias (added once per *pooled* output row)
    # o_ref   : (tm, Coutp)   f32 pooled conv output tile (lane-dense last dim)
    acc = jnp.dot(cols_ref[...], w_ref[...], preferred_element_type=jnp.float32)
    o_ref[...] = (acc + b_ref[...]).astype(o_ref.dtype)


@functools.partial(jax.jit, static_argnames=("kernel_size", "compute_dtype"))
def conv_mean_pool(x_nchw, weight_oihw, bias, kernel_size,
                   compute_dtype=jnp.bfloat16):
    """Matches PyTorch ConvMeanPool.forward (NCHW in / NCHW out)."""
    B, Cin, H, W = x_nchw.shape
    Cout = weight_oihw.shape[0]
    k = kernel_size
    assert k % 2 == 1, "ConvMeanPool assumes odd kernel_size ('same' padding)"
    assert H % 2 == 0 and W % 2 == 0, "ConvMeanPool assumes even H and W"
    p = (k - 1) // 2
    Ho, Wo = H // 2, W // 2
    KKC = k * k * Cin
    M = B * Ho * Wo

    # ---- glue: NCHW -> NHWC, pad (data layout only)
    x_nhwc = jnp.transpose(x_nchw, (0, 2, 3, 1)).astype(jnp.float32)
    xp = jnp.pad(x_nhwc, ((0, 0), (p, p), (p, p), (0, 0)))

    # ---- fold the 2x2 mean pool into the im2col patches (pooling is linear):
    #   pooled_conv[i,j] = sum_{dy,dx} pool2x2(slab_{dy,dx})[i,j] @ W[dy,dx] + bias
    # -> one GEMM with M = B*Ho*Wo; no pool matrix, no post-pool pass.
    pooled_slabs = []
    for dy in range(k):
        for dx in range(k):
            s = xp[:, dy:dy + H, dx:dx + W, :]                        # (B, H, W, Cin)
            s = (s[:, 0::2, 0::2] + s[:, 1::2, 0::2]
                 + s[:, 0::2, 1::2] + s[:, 1::2, 1::2]) * 0.25        # (B, Ho, Wo, Cin)
            pooled_slabs.append(s)
    cols = jnp.concatenate(pooled_slabs, axis=-1).reshape(M, KKC)     # (M, k*k*Cin)

    # ---- pad K to a sublane multiple, N (Cout) to a lane multiple (lane-dense out)
    KKCp = _round_up(KKC, 8)
    Coutp = _round_up(Cout, 128)
    cols = jnp.pad(cols, ((0, 0), (0, KKCp - KKC))).astype(compute_dtype)

    # (Cout, Cin, kh, kw) -> (kh, kw, Cin, Cout) -> (k*k*Cin, Cout), zero-padded
    w_flat = jnp.transpose(weight_oihw, (2, 3, 1, 0)).reshape(KKC, Cout)
    w_flat = jnp.pad(w_flat, ((0, KKCp - KKC), (0, Coutp - Cout))).astype(compute_dtype)
    bias2d = jnp.pad(bias.reshape(1, Cout).astype(jnp.float32),
                     ((0, 0), (0, Coutp - Cout)))

    # ---- collapse batch+space into GEMM M, tile it, run a "parallel" grid
    tm = min(512, _round_up(M, 16))
    Mp = _round_up(M, tm)
    cols = jnp.pad(cols, ((0, Mp - M), (0, 0)))

    out_flat = pl.pallas_call(
        _gemm_bias_kernel,
        out_shape=jax.ShapeDtypeStruct((Mp, Coutp), jnp.float32),
        grid=(Mp // tm,),
        in_specs=[
            pl.BlockSpec((tm, KKCp), lambda m: (m, 0)),
            pl.BlockSpec((KKCp, Coutp), lambda m: (0, 0)),
            pl.BlockSpec((1, Coutp), lambda m: (0, 0)),
        ],
        out_specs=pl.BlockSpec((tm, Coutp), lambda m: (m, 0)),
        compiler_params=pltpu.CompilerParams(
            dimension_semantics=("parallel",)),
    )(cols, w_flat, bias2d)

    # ---- glue: strip padding, (M, Coutp) -> NCHW (B, Cout, Ho, Wo)
    out = out_flat[:M, :Cout].reshape(B, Ho, Wo, Cout)
    return jnp.transpose(out, (0, 3, 1, 2))


def _reference(x_nchw, weight_oihw, bias, kernel_size):
    """Pure-JAX f32 reference with identical semantics to the PyTorch module."""
    p = (kernel_size - 1) // 2
    conv = lax.conv_general_dilated(
        x_nchw, weight_oihw,
        window_strides=(1, 1),
        padding=((p, p), (p, p)),
        dimension_numbers=("NCHW", "OIHW", "NCHW"),
    ) + bias.reshape(1, -1, 1, 1)
    return (conv[:, :, ::2, ::2] + conv[:, :, 1::2, ::2]
            + conv[:, :, ::2, 1::2] + conv[:, :, 1::2, 1::2]) / 4.0


if __name__ == "__main__":
    B, Cin, Cout, H, W, K = 2, 4, 8, 16, 16, 3

    key = jax.random.PRNGKey(0)
    kx, kw, kb = jax.random.split(key, 3)
    x = jax.random.normal(kx, (B, Cin, H, W), dtype=jnp.float32)
    # deterministic synthetic params matching nn.Conv2d(Cin, Cout, K) shapes
    weight = 0.1 * jax.random.normal(kw, (Cout, Cin, K, K), dtype=jnp.float32)
    bias = 0.1 * jax.random.normal(kb, (Cout,), dtype=jnp.float32)

    out = conv_mean_pool(x, weight, bias, kernel_size=K)
    jax.block_until_ready(out)

    ref = _reference(x, weight, bias, K)
    assert out.shape == (B, Cout, H // 2, W // 2), out.shape
    # bf16 GEMM inputs (f32 accumulation) -> relaxed tolerance vs f32 reference.
    assert jnp.allclose(out, ref, atol=3e-2, rtol=3e-2), \
        float(jnp.max(jnp.abs(out - ref)))

    print("KERNEL_OK")
</pallas_src>

<mosaic_0001>
module attributes {stable_mosaic.version = 11 : i64} {
  func.func @_gemm_bias_kernel(%arg0: i32, %arg1: memref<128x40xbf16, #tpu.memory_space<vmem>>, %arg2: memref<40x128xbf16, #tpu.memory_space<vmem>>, %arg3: memref<1x128xf32, #tpu.memory_space<vmem>>, %arg4: memref<128x128xf32, #tpu.memory_space<vmem>>) attributes {dimension_semantics = [#tpu.dimension_semantics<parallel>], iteration_bounds = array<i64: 1>, scalar_prefetch = 0 : i64, scratch_operands = 0 : i64, tpu.core_type = #tpu.core_type<tc>, window_params = [{transform_indices = @transform_0, window_bounds = array<i64: 128, 40>}, {pipeline_mode = #tpu.pipeline_mode<synchronous>, transform_indices = @transform_1, window_bounds = array<i64: 40, 128>}, {pipeline_mode = #tpu.pipeline_mode<synchronous>, transform_indices = @transform_2, window_bounds = array<i64: 1, 128>}, {transform_indices = @transform_3, window_bounds = array<i64: 128, 128>}]} {
    %c0 = arith.constant 0 : index
    %c0_0 = arith.constant 0 : index
    %0 = vector.load %arg1[%c0, %c0_0] : memref<128x40xbf16, #tpu.memory_space<vmem>>, vector<128x40xbf16>
    %c0_1 = arith.constant 0 : index
    %c0_2 = arith.constant 0 : index
    %1 = vector.load %arg2[%c0_1, %c0_2] : memref<40x128xbf16, #tpu.memory_space<vmem>>, vector<40x128xbf16>
    %cst = arith.constant dense<0.000000e+00> : vector<128x128xf32>
    %2 = tpu.matmul %0, %1, %cst {dimension_numbers = #tpu.dot_dimension_numbers<[1], [0], [0], [1], [0, 0, 1, 1], [], []>} : vector<128x40xbf16>, vector<40x128xbf16>, vector<128x128xf32> -> vector<128x128xf32>
    %c0_3 = arith.constant 0 : index
    %c0_4 = arith.constant 0 : index
    %3 = vector.load %arg3[%c0_3, %c0_4] : memref<1x128xf32, #tpu.memory_space<vmem>>, vector<1x128xf32>
    %4 = vector.broadcast %3 : vector<1x128xf32> to vector<128x128xf32>
    %5 = arith.addf %2, %4 : vector<128x128xf32>
    %c0_5 = arith.constant 0 : index
    %c0_6 = arith.constant 0 : index
    %6 = vector.load %arg4[%c0_5, %c0_6] : memref<128x128xf32, #tpu.memory_space<vmem>>, vector<128x128xf32>
    tpu.vector_store %arg4[%c0_5, %c0_6], %5 {strides = array<i32>} : memref<128x128xf32, #tpu.memory_space<vmem>>, vector<128x128xf32>,
    return
  }
  func.func @transform_0(%arg0: i32) -> (i32, i32) {
    %c0_i32 = arith.constant 0 : i32
    %c0_i32_0 = arith.constant 0 : i32
    return %arg0, %c0_i32 : i32, i32
  }
  func.func @transform_1(%arg0: i32) -> (i32, i32) {
    %c0_i32 = arith.constant 0 : i32
    %c0_i32_0 = arith.constant 0 : i32
    %c0_i32_1 = arith.constant 0 : i32
    return %c0_i32, %c0_i32_0 : i32, i32
  }
  func.func @transform_2(%arg0: i32) -> (i32, i32) {
    %c0_i32 = arith.constant 0 : i32
    %c0_i32_0 = arith.constant 0 : i32
    %c0_i32_1 = arith.constant 0 : i32
    return %c0_i32, %c0_i32_0 : i32, i32
  }
  func.func @transform_3(%arg0: i32) -> (i32, i32) {
    %c0_i32 = arith.constant 0 : i32
    %c0_i32_0 = arith.constant 0 : i32
    return %arg0, %c0_i32 : i32, i32
  }
}

</mosaic_0001>

<llo_original>
// kernel: conv_mean_pool.1
$region0: #{conv_mean_pool.1}
  #allocation0 [shape = 'u32[]', space=smem, size = 0x4, offset = 0x4, fixed_abs, tag = 'smem constant byte address 0x4 - core index']
  #allocation1 [shape = 'u32[144,128]{1,0:T(1,128)}', space=vmem, size = 0x12000, scoped, tag = 'internal scratch']
  %s0 = inlined_call_operand.vmem [shape: bf16[128,40], index: 0, kind: input, shape index: {}]
  %s1 = inlined_call_operand.vmem [shape: bf16[40,128], index: 1, kind: input, shape index: {}]
  %s2 = inlined_call_operand.vmem [shape: f32[1,128], index: 2, kind: input, shape index: {}]
  %s3 = inlined_call_operand.vmem [shape: f32[128,128], index: 3, kind: output, shape index: {}]
  %s4 = sld [smem:[#allocation0]]
  $region22: #{conv_mean_pool.1} parent=0
    _
  %s6 = ssub.s32 1, %s4
  %s7 = scalar_select 0, %s6, %s4
  // Predicated region
  $region2: #{conv_mean_pool.1} parent=0 // pred_check
    _
  $region3: #{conv_mean_pool.1} parent=0 // pred_check_branch
    %9 = sbr.rel (0) target = $region5
  $region4: #{conv_mean_pool.1} parent=0 // pred_region
    _
  $region5: #{conv_mean_pool.1} parent=0 // pred_fallthru
    _
  // Predicated region
  $region6: #{conv_mean_pool.1} parent=0 // pred_check
    _
  $region7: #{conv_mean_pool.1} parent=0 // pred_check_branch
    %11 = sbr.rel (0) target = $region9
  $region8: #{conv_mean_pool.1} parent=0 // pred_region
    _
  $region9: #{conv_mean_pool.1} parent=0 // pred_fallthru
    _
  // Predicated region
  $region10: #{conv_mean_pool.1} parent=0 // pred_check
    _
  $region11: #{conv_mean_pool.1} parent=0 // pred_check_branch
    %13 = sbr.rel (0) target = $region13
  $region12: #{conv_mean_pool.1} parent=0 // pred_region
    _
  $region13: #{conv_mean_pool.1} parent=0 // pred_fallthru
    _
  %v15 = vld [vmem:[%s0] sm:$0xf]
  %v16 = vld [vmem:[%s0 + $0x4] sm:$0xf]
  %v17 = vld [vmem:[%s0 + $0x8] sm:$0xf]
  %v18 = vld [vmem:[%s0 + $0xc] sm:$0xf]
  %v19 = vld [vmem:[%s0 + $0x10] sm:$0xf]
  %v20 = vld [vmem:[%s0 + $0x14] sm:$0xf]
  %v21 = vld [vmem:[%s0 + $0x18] sm:$0xf]
  %v22 = vld [vmem:[%s0 + $0x1c] sm:$0xf]
  %v23 = vld [vmem:[%s0 + $0x20] sm:$0xf]
  %v24 = vld [vmem:[%s0 + $0x24] sm:$0xf]
  %v25 = vld [vmem:[%s0 + $0x28] sm:$0xf]
  %v26 = vld [vmem:[%s0 + $0x2c] sm:$0xf]
  %v27 = vld [vmem:[%s0 + $0x30] sm:$0xf]
  %v28 = vld [vmem:[%s0 + $0x34] sm:$0xf]
  %v29 = vld [vmem:[%s0 + $0x38] sm:$0xf]
  %v30 = vld [vmem:[%s0 + $0x3c] sm:$0xf]
  %v31 = vld [vmem:[%s1] sm:$0xf]
  %v32 = vld [vmem:[%s1 + $0x4] sm:$0xf]
  %v33 = vld [vmem:[%s1 + $0x8] sm:$0xf]
  %v34 = vld [vmem:[%s1 + $0xc] sm:$0xf]
  %v35 = vld [vmem:[%s1 + $0x10] sm:$0xf]
  %v36 = vld [vmem:[%s2] sm:$0x1]
  %v38 = vlaneseq
  %v39 = vshrl.u32 %v38, 7
  %v40 = vsub.s32 0, %v39
  %v41 = vrot.slane %v36, %v40
  %v59 = vunpack.c.l.b16 %v15
  %v60 = vunpack.c.l.b16 %v16
  %v61 = vunpack.c.l.b16 %v17
  %v62 = vunpack.c.l.b16 %v18
  %v63 = vunpack.c.l.b16 %v19
  %v64 = vunpack.c.l.b16 %v20
  %v65 = vunpack.c.l.b16 %v21
  %v66 = vunpack.c.l.b16 %v22
  %v67 = vunpack.c.l.b16 %v23
  %v68 = vunpack.c.l.b16 %v24
  %v69 = vunpack.c.l.b16 %v25
  %v70 = vunpack.c.l.b16 %v26
  %v71 = vunpack.c.l.b16 %v27
  %v72 = vunpack.c.l.b16 %v28
  %v73 = vunpack.c.l.b16 %v29
  %v74 = vunpack.c.l.b16 %v30
  %v75 = vpack.c.b16 %v60, %v59
  %v76 = vpack.c.b16 %v62, %v61
  %v77 = vpack.c.b16 %v64, %v63
  %v78 = vpack.c.b16 %v66, %v65
  %v79 = vpack.c.b16 %v68, %v67
  %v80 = vpack.c.b16 %v70, %v69
  %v81 = vpack.c.b16 %v72, %v71
  %v82 = vpack.c.b16 %v74, %v73
  %v88 = vunpack.c.l.b16 %v31
  %v89 = vunpack.c.l.b16 %v32
  %v90 = vunpack.c.l.b16 %v33
  %v91 = vunpack.c.l.b16 %v34
  %v92 = vunpack.c.l.b16 %v35
  %v93 = vpack.c.b16 %v89, %v88
  %v94 = vpack.c.b16 %v91, %v90
  %v95 = vpack.c.b16 %v92, %v92
  %vm98 = vcmask 326656
  %v100 = vsel %vm98, %v75, 0
  %v103 = vsel %vm98, %v76, 0
  %v106 = vsel %vm98, %v77, 0
  %v109 = vsel %vm98, %v78, 0
  %v112 = vsel %vm98, %v79, 0
  %v115 = vsel %vm98, %v80, 0
  %v118 = vsel %vm98, %v81, 0
  %v121 = vsel %vm98, %v82, 0
  %vm123 = vcmask 1043456
  %v125 = vsel %vm123, %v95, 0
  %127 = vmatprep.subr.bf16.mxu0 0
  %128 = vmatpush1.bf16.msra.mxu0 %v93
  %129 = vmatprep.subr.bf16.mxu0 0
  %130 = vmatpush1.bf16.msra.mxu0 %v94
  %131 = vmatprep.subr.bf16.mxu0 0
  %132 = vmatpush1.bf16.msra.mxu0 %v125
  %133 = vmatprep.subr.bf16.mxu0 0
  %134 = vmatpush1.bf16.msra.mxu0 0
  %135 = vmatprep.subr.bf16.mxu0 0
  %136 = vmatpush1.bf16.msra.mxu0 0
  %137 = vmatprep.subr.bf16.mxu0 0
  %138 = vmatpush1.bf16.msra.mxu0 0
  %139 = vmatprep.subr.bf16.mxu0 0
  %140 = vmatpush1.bf16.msra.mxu0 0
  %141 = vmatprep.subr.bf16.mxu0 0
  %142 = vmatpush1.bf16.msra.mxu0 0
  %143 = vmatprep.subr.bf16.mxu0 0
  %144 = vmatpush1.bf16.msra.mxu0 0
  %145 = vmatprep.subr.bf16.mxu0 0
  %146 = vmatpush1.bf16.msra.mxu0 0
  %147 = vmatprep.subr.bf16.mxu0 0
  %148 = vmatpush1.bf16.msra.mxu0 0
  %149 = vmatprep.subr.bf16.mxu0 0
  %150 = vmatpush1.bf16.msra.mxu0 0
  %151 = vmatprep.subr.bf16.mxu0 0
  %152 = vmatpush1.bf16.msra.mxu0 0
  %153 = vmatprep.subr.bf16.mxu0 0
  %154 = vmatpush1.bf16.msra.mxu0 0
  %155 = vmatprep.subr.bf16.mxu0 0
  %156 = vmatpush1.bf16.msra.mxu0 0
  %157 = vmatprep.subr.bf16.mxu0 0
  %158 = vmatpush1.bf16.msra.mxu0 0
  %159 = vmatprep.mubr.bf16.mxu0 0
  %160 = vmatmul.mubr.bf16.gmra.mrb[0].mxu0 %v100
  %v161 = vpop.f32.mrb[0].mxu0
  %v162 = vadd.f32 %v41, %v161
  %v163 = vpop.f32.mrb[0].mxu0
  %v164 = vpop.f32.mrb[0].mxu0
  %v165 = vadd.f32 %v41, %v164
  %v166 = vpop.f32.mrb[0].mxu0
  %167 = vmatprep.mubr.bf16.mxu0 0
  %168 = vmatmul.mubr.bf16.gmra.mrb[0].mxu0 %v103
  %v169 = vpop.f32.mrb[0].mxu0
  %v170 = vadd.f32 %v41, %v169
  %v171 = vpop.f32.mrb[0].mxu0
  %v172 = vpop.f32.mrb[0].mxu0
  %v173 = vadd.f32 %v41, %v172
  %v174 = vpop.f32.mrb[0].mxu0
  %175 = vmatprep.mubr.bf16.mxu0 0
  %176 = vmatmul.mubr.bf16.gmra.mrb[0].mxu0 %v106
  %v177 = vpop.f32.mrb[0].mxu0
  %v178 = vadd.f32 %v41, %v177
  %v179 = vpop.f32.mrb[0].mxu0
  %v180 = vpop.f32.mrb[0].mxu0
  %v181 = vadd.f32 %v41, %v180
  %v182 = vpop.f32.mrb[0].mxu0
  %183 = vmatprep.mubr.bf16.mxu0 0
  %184 = vmatmul.mubr.bf16.gmra.mrb[0].mxu0 %v109
  %v185 = vpop.f32.mrb[0].mxu0
  %v186 = vadd.f32 %v41, %v185
  %v187 = vpop.f32.mrb[0].mxu0
  %v188 = vpop.f32.mrb[0].mxu0
  %v189 = vadd.f32 %v41, %v188
  %v190 = vpop.f32.mrb[0].mxu0
  %191 = vmatprep.mubr.bf16.mxu0 0
  %192 = vmatmul.mubr.bf16.gmra.mrb[0].mxu0 %v112
  %v193 = vpop.f32.mrb[0].mxu0
  %v194 = vadd.f32 %v41, %v193
  %v195 = vpop.f32.mrb[0].mxu0
  %v196 = vpop.f32.mrb[0].mxu0
  %v197 = vadd.f32 %v41, %v196
  %v198 = vpop.f32.mrb[0].mxu0
  %199 = vmatprep.mubr.bf16.mxu0 0
  %200 = vmatmul.mubr.bf16.gmra.mrb[0].mxu0 %v115
  %v201 = vpop.f32.mrb[0].mxu0
  %v202 = vadd.f32 %v41, %v201
  %v203 = vpop.f32.mrb[0].mxu0
  %v204 = vpop.f32.mrb[0].mxu0
  %v205 = vadd.f32 %v41, %v204
  %v206 = vpop.f32.mrb[0].mxu0
  %207 = vmatprep.mubr.bf16.mxu0 0
  %208 = vmatmul.mubr.bf16.gmra.mrb[0].mxu0 %v118
  %v209 = vpop.f32.mrb[0].mxu0
  %v210 = vadd.f32 %v41, %v209
  %v211 = vpop.f32.mrb[0].mxu0
  %v212 = vpop.f32.mrb[0].mxu0
  %v213 = vadd.f32 %v41, %v212
  %v214 = vpop.f32.mrb[0].mxu0
  %215 = vmatprep.mubr.bf16.mxu0 0
  %216 = vmatmul.mubr.bf16.gmra.mrb[0].mxu0 %v121
  %v217 = vpop.f32.mrb[0].mxu0
  %v218 = vadd.f32 %v41, %v217
  %v219 = vpop.f32.mrb[0].mxu0
  %v220 = vpop.f32.mrb[0].mxu0
  %v221 = vadd.f32 %v41, %v220
  %v222 = vpop.f32.mrb[0].mxu0
  %223 = vdwg.mxu0
  %224 = vst [vmem:[%s3] sm:$0xff] %v162
  %225 = vst [vmem:[%s3 + $0x8] sm:$0xff] %v165
  %226 = vst [vmem:[%s3 + $0x10] sm:$0xff] %v170
  %227 = vst [vmem:[%s3 + $0x18] sm:$0xff] %v173
  %228 = vst [vmem:[%s3 + $0x20] sm:$0xff] %v178
  %229 = vst [vmem:[%s3 + $0x28] sm:$0xff] %v181
  %230 = vst [vmem:[%s3 + $0x30] sm:$0xff] %v186
  %231 = vst [vmem:[%s3 + $0x38] sm:$0xff] %v189
  %232 = vst [vmem:[%s3 + $0x40] sm:$0xff] %v194
  %233 = vst [vmem:[%s3 + $0x48] sm:$0xff] %v197
  %234 = vst [vmem:[%s3 + $0x50] sm:$0xff] %v202
  %235 = vst [vmem:[%s3 + $0x58] sm:$0xff] %v205
  %236 = vst [vmem:[%s3 + $0x60] sm:$0xff] %v210
  %237 = vst [vmem:[%s3 + $0x68] sm:$0xff] %v213
  %238 = vst [vmem:[%s3 + $0x70] sm:$0xff] %v218
  %239 = vst [vmem:[%s3 + $0x78] sm:$0xff] %v221
  // Predicated region
  $region14: #{conv_mean_pool.1} parent=0 // pred_check
    _
  $region15: #{conv_mean_pool.1} parent=0 // pred_check_branch
    %241 = sbr.rel (0) target = $region17
  $region16: #{conv_mean_pool.1} parent=0 // pred_region
    _
  $region17: #{conv_mean_pool.1} parent=0 // pred_fallthru
    _
  // Predicated region
  $region18: #{conv_mean_pool.1} parent=0 // pred_check
    _
  $region19: #{conv_mean_pool.1} parent=0 // pred_check_branch
    %243 = sbr.rel (0) target = $region21
  $region20: #{conv_mean_pool.1} parent=0 // pred_region
    _
  $region21: #{conv_mean_pool.1} parent=0 // pred_fallthru
    _

</llo_original>
